<compile_context>
chip_gen: v6e
topology: v6e:2x2x1
jax: 0.10.0
libtpu: 0.0.40
codegen_flags: <defaults>
</compile_context>

<pallas_src>
import functools

import jax
import jax.numpy as jnp
from jax import lax
from jax.experimental import pallas as pl
from jax.experimental.pallas import tpu as pltpu


def _round_up(x, m):
    return ((x + m - 1) // m) * m


def _conloss_kernel(pos_ref, neg_ref, out_ref, *, temperature, batch_size,
                    contrast_count, n_valid, block_rows):
    """One grid step = one block of `block_rows` anchor rows.

    pos_ref / neg_ref : [n_pad, d_pad] contrast features (rows >= n_valid and
                        lanes >= D are zero padding), resident across the grid.
    out_ref           : [1, 1] running sum of -mean_log_prob_pos over rows.
    """
    i = pl.program_id(0)
    tm = block_rows
    n_pad = pos_ref.shape[0]
    r0 = pl.multiple_of(i * tm, tm)

    inv_t = jnp.float32(1.0 / temperature)
    neg_big = jnp.float32(-1e30)

    # Anchor (query) row block + full contrast (key) set.
    q_pos = pos_ref[pl.ds(r0, tm), :].astype(jnp.float32)     # [tm, Dp]
    q_neg = neg_ref[pl.ds(r0, tm), :].astype(jnp.float32)     # [tm, Dp]
    k_pos = pos_ref[...].astype(jnp.float32)                  # [Np, Dp]
    k_neg = neg_ref[...].astype(jnp.float32)                  # [Np, Dp]

    # Contract the last dim of both operands -> no explicit transpose copy.
    dn = (((1,), (1,)), ((), ()))
    pos_dot = lax.dot_general(q_pos, k_pos, dn,
                              preferred_element_type=jnp.float32) * inv_t
    neg_dot = lax.dot_general(q_neg, k_neg, dn,
                              preferred_element_type=jnp.float32) * inv_t

    row_g = r0 + lax.broadcasted_iota(jnp.int32, (tm, n_pad), 0)
    col_g = lax.broadcasted_iota(jnp.int32, (tm, n_pad), 1)
    valid_col = col_g < n_valid                      # exclude zero-padded keys
    offdiag = row_g != col_g                         # logits_mask
    same = (row_g % batch_size) == (col_g % batch_size)  # eye(B).repeat(C, C)

    pos_dot = jnp.where(valid_col, pos_dot, neg_big)
    neg_dot = jnp.where(valid_col, neg_dot, neg_big)

    # Per-row max subtraction, exactly as the PyTorch module does (per matrix).
    pos_max = jnp.max(pos_dot, axis=1, keepdims=True)
    neg_max = jnp.max(neg_dot, axis=1, keepdims=True)
    pos_logits = pos_dot - pos_max                   # [tm, Np]
    neg_logits = neg_dot - neg_max                   # [tm, Np]

    exp_mask = offdiag & valid_col
    sum_exp_pos = jnp.sum(jnp.where(exp_mask, jnp.exp(pos_logits), 0.0),
                          axis=1, keepdims=True)     # [tm, 1]
    sum_exp_neg = jnp.sum(jnp.where(exp_mask, jnp.exp(neg_logits), 0.0),
                          axis=1, keepdims=True)     # [tm, 1]

    # sum(mask * log_prob, 1) = sum(mask * pos_logits, 1) - (C-1)*log(denom);
    # sum(mask, 1) == contrast_count - 1 is a compile-time constant, so the
    # full [n, n] log_prob tensor is never materialized.
    num_mask = same & exp_mask
    numer = jnp.sum(jnp.where(num_mask, pos_logits, 0.0),
                    axis=1, keepdims=True)           # [tm, 1]
    inv_npos = jnp.float32(1.0 / (contrast_count - 1))
    mean_log_prob_pos = numer * inv_npos - jnp.log(sum_exp_pos + sum_exp_neg)

    # Padded anchor rows contribute nothing.
    row_ids = r0 + lax.broadcasted_iota(jnp.int32, (tm, 1), 0)
    per_row = jnp.where(row_ids < n_valid, -mean_log_prob_pos, 0.0)
    block_loss = jnp.sum(per_row, axis=0, keepdims=True)      # [1, 1]

    @pl.when(i == 0)
    def _init():
        out_ref[...] = jnp.zeros_like(out_ref)

    out_ref[...] += block_loss


def con_loss(pos_features, neg_features, temperature=0.05, block_rows=256):
    """Pallas implementation of ConLoss.forward (features: [B, C, D])."""
    b, c, d = pos_features.shape
    assert c >= 2, "contrast_count must be >= 2 (mask row-sum is C - 1)"
    n = b * c

    d_pad = max(128, _round_up(d, 128))              # lane-dense MXU operand
    tm = min(block_rows, _round_up(n, 8))            # anchor rows per block
    n_pad = _round_up(n, tm)
    num_blocks = n_pad // tm

    def prep(f):
        # torch.cat(torch.unbind(f, dim=1), dim=0): [B, C, D] -> [C*B, D],
        # then zero-pad rows/lanes (zeros do not change the Gram matrix).
        cf = jnp.swapaxes(f, 0, 1).reshape(n, d).astype(jnp.float32)
        return jnp.pad(cf, ((0, n_pad - n), (0, d_pad - d)))

    pos_c = prep(pos_features)
    neg_c = prep(neg_features)

    kernel = functools.partial(
        _conloss_kernel,
        temperature=float(temperature),
        batch_size=b,
        contrast_count=c,
        n_valid=n,
        block_rows=tm,
    )

    loss_sum = pl.pallas_call(
        kernel,
        out_shape=jax.ShapeDtypeStruct((1, 1), jnp.float32),
        grid=(num_blocks,),
        in_specs=[
            pl.BlockSpec((n_pad, d_pad), lambda i: (0, 0)),   # resident keys
            pl.BlockSpec((n_pad, d_pad), lambda i: (0, 0)),
        ],
        out_specs=pl.BlockSpec((1, 1), lambda i: (0, 0)),     # accumulator
        compiler_params=pltpu.CompilerParams(
            dimension_semantics=("arbitrary",),               # accumulator axis
            vmem_limit_bytes=48 * 1024 * 1024,                # safe on v7x 64MiB
        ),
    )(pos_c, neg_c)

    # loss.view(C, B).mean() == mean over all C*B anchor rows.
    return loss_sum[0, 0] / jnp.float32(n)


def con_loss_ref(pos_features, neg_features, temperature=0.05):
    """Pure-JAX reference mirroring the PyTorch module line by line."""
    def calc(features):
        b, c, _ = features.shape
        n = b * c
        cf = jnp.concatenate([features[:, i, :] for i in range(c)], axis=0)
        adc = (cf @ cf.T) / temperature
        lmax = jnp.max(adc, axis=1, keepdims=True)
        logits = adc - lmax
        mask = jnp.tile(jnp.eye(b, dtype=jnp.float32), (c, c))
        logits_mask = 1.0 - jnp.eye(n, dtype=jnp.float32)
        mask = mask * logits_mask
        exp_logits = jnp.exp(logits) * logits_mask
        return logits, jnp.sum(exp_logits, axis=1, keepdims=True), mask

    b, c, _ = pos_features.shape
    pos_logits, sum_exp_pos, mask = calc(pos_features)
    _, sum_exp_neg, _ = calc(neg_features)
    log_prob = pos_logits - jnp.log(sum_exp_pos + sum_exp_neg)
    mean_log_prob_pos = jnp.sum(mask * log_prob, axis=1) / jnp.sum(mask, axis=1)
    return jnp.mean((-mean_log_prob_pos).reshape(c, b))


if __name__ == "__main__":
    key = jax.random.PRNGKey(0)
    k1, k2 = jax.random.split(key)
    B, C, D = 8, 2, 32  # batch, (anchor, pos/neg), emb_dim

    # L2-normalize the embeddings (standard for contrastive losses).  With
    # unnormalized random features and T=0.05 the module itself produces
    # log(0) = -inf / NaN, which is what broke the previous test run.
    def l2norm(x):
        return x / (jnp.linalg.norm(x, axis=-1, keepdims=True) + 1e-12)

    pos_features = l2norm(jax.random.normal(k1, (B, C, D), dtype=jnp.float32))
    neg_features = l2norm(jax.random.normal(k2, (B, C, D), dtype=jnp.float32))

    loss = con_loss(pos_features, neg_features, temperature=0.05)
    jax.block_until_ready(loss)

    loss_ref = con_loss_ref(pos_features, neg_features, temperature=0.05)
    assert bool(jnp.isfinite(loss)), loss
    assert jnp.allclose(loss, loss_ref, atol=1e-3, rtol=1e-3), (loss, loss_ref)

    print("KERNEL_OK")
</pallas_src>

<mosaic_0001>
module attributes {stable_mosaic.version = 11 : i64} {
  func.func @_conloss_kernel(%arg0: i32, %arg1: memref<16x128xf32, #tpu.memory_space<vmem>>, %arg2: memref<16x128xf32, #tpu.memory_space<vmem>>, %arg3: memref<1x1xf32, #tpu.memory_space<vmem>>) attributes {dimension_semantics = [#tpu.dimension_semantics<arbitrary>], iteration_bounds = array<i64: 1>, scalar_prefetch = 0 : i64, scratch_operands = 0 : i64, tpu.core_type = #tpu.core_type<tc>, window_params = [{pipeline_mode = #tpu.pipeline_mode<synchronous>, transform_indices = @transform_0, window_bounds = array<i64: 16, 128>}, {pipeline_mode = #tpu.pipeline_mode<synchronous>, transform_indices = @transform_1, window_bounds = array<i64: 16, 128>}, {pipeline_mode = #tpu.pipeline_mode<synchronous>, transform_indices = @transform_2, window_bounds = array<i64: 1, 1>}]} {
    %c16_i32 = arith.constant 16 : i32
    %0 = arith.muli %arg0, %c16_i32 : i32
    %1 = tpu.assume_multiple %0, 16 : i32
    %2 = arith.index_cast %1 : i32 to index
    %c0 = arith.constant 0 : index
    %3 = vector.load %arg1[%2, %c0] : memref<16x128xf32, #tpu.memory_space<vmem>>, vector<16x128xf32>
    %4 = arith.index_cast %1 : i32 to index
    %c0_0 = arith.constant 0 : index
    %5 = vector.load %arg2[%4, %c0_0] : memref<16x128xf32, #tpu.memory_space<vmem>>, vector<16x128xf32>
    %c0_1 = arith.constant 0 : index
    %c0_2 = arith.constant 0 : index
    %6 = vector.load %arg1[%c0_1, %c0_2] : memref<16x128xf32, #tpu.memory_space<vmem>>, vector<16x128xf32>
    %c0_3 = arith.constant 0 : index
    %c0_4 = arith.constant 0 : index
    %7 = vector.load %arg2[%c0_3, %c0_4] : memref<16x128xf32, #tpu.memory_space<vmem>>, vector<16x128xf32>
    %cst = arith.constant dense<0.000000e+00> : vector<16x16xf32>
    %8 = tpu.matmul %3, %6, %cst {dimension_numbers = #tpu.dot_dimension_numbers<[1], [1], [0], [0], [0, 0, 1, 0], [], []>} : vector<16x128xf32>, vector<16x128xf32>, vector<16x16xf32> -> vector<16x16xf32>
    %cst_5 = arith.constant 2.000000e+01 : f32
    %9 = vector.broadcast %cst_5 : f32 to vector<16x16xf32>
    %10 = arith.mulf %8, %9 : vector<16x16xf32>
    %cst_6 = arith.constant dense<0.000000e+00> : vector<16x16xf32>
    %11 = tpu.matmul %5, %7, %cst_6 {dimension_numbers = #tpu.dot_dimension_numbers<[1], [1], [0], [0], [0, 0, 1, 0], [], []>} : vector<16x128xf32>, vector<16x128xf32>, vector<16x16xf32> -> vector<16x16xf32>
    %cst_7 = arith.constant 2.000000e+01 : f32
    %12 = vector.broadcast %cst_7 : f32 to vector<16x16xf32>
    %13 = arith.mulf %11, %12 : vector<16x16xf32>
    %14 = tpu.iota {dimensions = array<i32: 0>} : vector<16x16xi32>
    %15 = vector.broadcast %1 : i32 to vector<16x16xi32>
    %16 = arith.addi %15, %14 : vector<16x16xi32>
    %17 = tpu.iota {dimensions = array<i32: 1>} : vector<16x16xi32>
    %c16_i32_8 = arith.constant 16 : i32
    %18 = vector.broadcast %c16_i32_8 : i32 to vector<16x16xi32>
    %19 = arith.cmpi slt, %17, %18 : vector<16x16xi32>
    %20 = arith.cmpi ne, %16, %17 : vector<16x16xi32>
    %c8_i32 = arith.constant 8 : i32
    %c0_i32 = arith.constant 0 : i32
    %21 = arith.cmpi eq, %c8_i32, %c0_i32 : i32
    %c1_i32 = arith.constant 1 : i32
    %22 = arith.select %21, %c1_i32, %c8_i32 : i32
    %23 = vector.broadcast %22 : i32 to vector<16x16xi32>
    %24 = arith.remsi %16, %23 : vector<16x16xi32>
    %c0_i32_9 = arith.constant 0 : i32
    %25 = vector.broadcast %c0_i32_9 : i32 to vector<16x16xi32>
    %26 = arith.cmpi ne, %24, %25 : vector<16x16xi32>
    %c0_i32_10 = arith.constant 0 : i32
    %27 = vector.broadcast %c0_i32_10 : i32 to vector<16x16xi32>
    %28 = arith.cmpi slt, %24, %27 : vector<16x16xi32>
    %c0_i32_11 = arith.constant 0 : i32
    %29 = arith.cmpi slt, %22, %c0_i32_11 : i32
    %30 = vector.broadcast %29 : i1 to vector<16x16xi1>
    %31 = vector.broadcast %30 : vector<16x16xi1> to vector<16x16xi1>
    %32 = arith.xori %28, %31 : vector<16x16xi1>
    %33 = arith.andi %32, %26 : vector<16x16xi1>
    %34 = vector.broadcast %22 : i32 to vector<16x16xi32>
    %35 = arith.addi %24, %34 : vector<16x16xi32>
    %36 = arith.select %33, %35, %24 : vector<16x16xi1>, vector<16x16xi32>
    %c8_i32_12 = arith.constant 8 : i32
    %c0_i32_13 = arith.constant 0 : i32
    %37 = arith.cmpi eq, %c8_i32_12, %c0_i32_13 : i32
    %c1_i32_14 = arith.constant 1 : i32
    %38 = arith.select %37, %c1_i32_14, %c8_i32_12 : i32
    %39 = vector.broadcast %38 : i32 to vector<16x16xi32>
    %40 = arith.remsi %17, %39 : vector<16x16xi32>
    %c0_i32_15 = arith.constant 0 : i32
    %41 = vector.broadcast %c0_i32_15 : i32 to vector<16x16xi32>
    %42 = arith.cmpi ne, %40, %41 : vector<16x16xi32>
    %c0_i32_16 = arith.constant 0 : i32
    %43 = vector.broadcast %c0_i32_16 : i32 to vector<16x16xi32>
    %44 = arith.cmpi slt, %40, %43 : vector<16x16xi32>
    %c0_i32_17 = arith.constant 0 : i32
    %45 = arith.cmpi slt, %38, %c0_i32_17 : i32
    %46 = vector.broadcast %45 : i1 to vector<16x16xi1>
    %47 = vector.broadcast %46 : vector<16x16xi1> to vector<16x16xi1>
    %48 = arith.xori %44, %47 : vector<16x16xi1>
    %49 = arith.andi %48, %42 : vector<16x16xi1>
    %50 = vector.broadcast %38 : i32 to vector<16x16xi32>
    %51 = arith.addi %40, %50 : vector<16x16xi32>
    %52 = arith.select %49, %51, %40 : vector<16x16xi1>, vector<16x16xi32>
    %53 = arith.cmpi eq, %36, %52 : vector<16x16xi32>
    %cst_18 = arith.constant -1.000000e+30 : f32
    %54 = vector.broadcast %cst_18 : f32 to vector<16x16xf32>
    %55 = arith.select %19, %10, %54 : vector<16x16xi1>, vector<16x16xf32>
    %cst_19 = arith.constant -1.000000e+30 : f32
    %56 = vector.broadcast %cst_19 : f32 to vector<16x16xf32>
    %57 = arith.select %19, %13, %56 : vector<16x16xi1>, vector<16x16xf32>
    %cst_20 = arith.constant dense<0xFF800000> : vector<16xf32>
    %58 = vector.multi_reduction <maximumf>, %55, %cst_20 [1] : vector<16x16xf32> to vector<16xf32>
    %59 = vector.shape_cast %58 : vector<16xf32> to vector<16x1xf32>
    %cst_21 = arith.constant dense<0xFF800000> : vector<16xf32>
    %60 = vector.multi_reduction <maximumf>, %57, %cst_21 [1] : vector<16x16xf32> to vector<16xf32>
    %61 = vector.shape_cast %60 : vector<16xf32> to vector<16x1xf32>
    %62 = vector.broadcast %59 : vector<16x1xf32> to vector<16x16xf32>
    %63 = arith.subf %55, %62 : vector<16x16xf32>
    %64 = vector.broadcast %61 : vector<16x1xf32> to vector<16x16xf32>
    %65 = arith.subf %57, %64 : vector<16x16xf32>
    %66 = arith.andi %20, %19 : vector<16x16xi1>
    %67 = math.exp %63 : vector<16x16xf32>
    %cst_22 = arith.constant 0.000000e+00 : f32
    %68 = vector.broadcast %cst_22 : f32 to vector<16x16xf32>
    %69 = arith.select %66, %67, %68 : vector<16x16xi1>, vector<16x16xf32>
    %cst_23 = arith.constant dense<0.000000e+00> : vector<16xf32>
    %70 = vector.multi_reduction <add>, %69, %cst_23 [1] : vector<16x16xf32> to vector<16xf32>
    %71 = vector.shape_cast %70 : vector<16xf32> to vector<16x1xf32>
    %72 = math.exp %65 : vector<16x16xf32>
    %cst_24 = arith.constant 0.000000e+00 : f32
    %73 = vector.broadcast %cst_24 : f32 to vector<16x16xf32>
    %74 = arith.select %66, %72, %73 : vector<16x16xi1>, vector<16x16xf32>
    %cst_25 = arith.constant dense<0.000000e+00> : vector<16xf32>
    %75 = vector.multi_reduction <add>, %74, %cst_25 [1] : vector<16x16xf32> to vector<16xf32>
    %76 = vector.shape_cast %75 : vector<16xf32> to vector<16x1xf32>
    %77 = arith.andi %53, %66 : vector<16x16xi1>
    %cst_26 = arith.constant 0.000000e+00 : f32
    %78 = vector.broadcast %cst_26 : f32 to vector<16x16xf32>
    %79 = arith.select %77, %63, %78 : vector<16x16xi1>, vector<16x16xf32>
    %cst_27 = arith.constant dense<0.000000e+00> : vector<16xf32>
    %80 = vector.multi_reduction <add>, %79, %cst_27 [1] : vector<16x16xf32> to vector<16xf32>
    %81 = vector.shape_cast %80 : vector<16xf32> to vector<16x1xf32>
    %cst_28 = arith.constant 1.000000e+00 : f32
    %82 = vector.broadcast %cst_28 : f32 to vector<16x1xf32>
    %83 = arith.mulf %81, %82 : vector<16x1xf32>
    %84 = arith.addf %71, %76 : vector<16x1xf32>
    %85 = math.log %84 : vector<16x1xf32>
    %86 = arith.subf %83, %85 : vector<16x1xf32>
    %87 = tpu.iota {dimensions = array<i32: 0>} : vector<16x1xi32>
    %88 = vector.broadcast %1 : i32 to vector<16x1xi32>
    %89 = arith.addi %88, %87 : vector<16x1xi32>
    %c16_i32_29 = arith.constant 16 : i32
    %90 = vector.broadcast %c16_i32_29 : i32 to vector<16x1xi32>
    %91 = arith.cmpi slt, %89, %90 : vector<16x1xi32>
    %cst_30 = arith.constant 0.000000e+00 : f32
    %92 = vector.broadcast %cst_30 : f32 to vector<16x1xf32>
    %93 = arith.subf %92, %86 : vector<16x1xf32>
    %cst_31 = arith.constant 0.000000e+00 : f32
    %94 = vector.broadcast %cst_31 : f32 to vector<16x1xf32>
    %95 = arith.select %91, %93, %94 : vector<16x1xi1>, vector<16x1xf32>
    %cst_32 = arith.constant dense<0.000000e+00> : vector<1xf32>
    %96 = vector.multi_reduction <add>, %95, %cst_32 [0] : vector<16x1xf32> to vector<1xf32>
    %97 = vector.shape_cast %96 : vector<1xf32> to vector<1x1xf32>
    %c0_i32_33 = arith.constant 0 : i32
    %98 = arith.cmpi eq, %arg0, %c0_i32_33 : i32
    %99 = arith.extui %98 : i1 to i32
    %c0_i32_34 = arith.constant 0 : i32
    %100 = arith.cmpi ne, %99, %c0_i32_34 : i32
    scf.if %100 {
      %cst_39 = arith.constant 0.000000e+00 : f32
      %104 = vector.broadcast %cst_39 : f32 to vector<1x1xf32>
      %c0_40 = arith.constant 0 : index
      %c0_41 = arith.constant 0 : index
      %105 = vector.load %arg3[%c0_40, %c0_41] : memref<1x1xf32, #tpu.memory_space<vmem>>, vector<1x1xf32>
      tpu.vector_store %arg3[%c0_40, %c0_41], %104 {strides = array<i32>} : memref<1x1xf32, #tpu.memory_space<vmem>>, vector<1x1xf32>,
    } else {
    }
    %c0_35 = arith.constant 0 : index
    %c0_36 = arith.constant 0 : index
    %101 = vector.load %arg3[%c0_35, %c0_36] : memref<1x1xf32, #tpu.memory_space<vmem>>, vector<1x1xf32>
    %102 = arith.addf %101, %97 : vector<1x1xf32>
    %c0_37 = arith.constant 0 : index
    %c0_38 = arith.constant 0 : index
    %103 = vector.load %arg3[%c0_37, %c0_38] : memref<1x1xf32, #tpu.memory_space<vmem>>, vector<1x1xf32>
    tpu.vector_store %arg3[%c0_37, %c0_38], %102 {strides = array<i32>} : memref<1x1xf32, #tpu.memory_space<vmem>>, vector<1x1xf32>,
    return
  }
  func.func @transform_0(%arg0: i32) -> (i32, i32) {
    %c0_i32 = arith.constant 0 : i32
    %c0_i32_0 = arith.constant 0 : i32
    %c0_i32_1 = arith.constant 0 : i32
    return %c0_i32, %c0_i32_0 : i32, i32
  }
  func.func @transform_1(%arg0: i32) -> (i32, i32) {
    %c0_i32 = arith.constant 0 : i32
    %c0_i32_0 = arith.constant 0 : i32
    %c0_i32_1 = arith.constant 0 : i32
    return %c0_i32, %c0_i32_0 : i32, i32
  }
  func.func @transform_2(%arg0: i32) -> (i32, i32) {
    %c0_i32 = arith.constant 0 : i32
    %c0_i32_0 = arith.constant 0 : i32
    %c0_i32_1 = arith.constant 0 : i32
    return %c0_i32, %c0_i32_0 : i32, i32
  }
}

</mosaic_0001>

<llo_original>
// kernel: tpu_custom_call.1
$region0: #{tpu_custom_call.1}
  #allocation0 [shape = 'u32[]', space=smem, size = 0x4, offset = 0x4, fixed_abs, tag = 'smem constant byte address 0x4 - core index']
  #allocation1 [shape = 'u32[144,128]{1,0:T(1,128)}', space=vmem, size = 0x12000, scoped, tag = 'internal scratch']
  %s0 = inlined_call_operand.hbm [shape: f32[16,128], index: 0, kind: input, shape index: {}]
  %s1 = inlined_call_operand.hbm [shape: f32[16,128], index: 1, kind: input, shape index: {}]
  %s2 = inlined_call_operand.hbm [shape: f32[1,1], index: 2, kind: output, shape index: {}]
  %s3 = sld [smem:[#allocation0]]
  $region30: #{tpu_custom_call.1} parent=0
    _
  %s5 = ssub.s32 1, %s3
  %s6 = scalar_select 0, %s5, %s3
  $region1: #{tpu_custom_call.1} parent=0
    #allocation2 [shape = 'u8[8192]{0}', space=vmem, size = 0x2000, scoped, tag = 'input window, operand 0, single buffered']
    #allocation3 [shape = 's32[1]{0}', space=sflag, size = 0x4, scoped, tag = 'scoped memory for tpu_custom_call.1']
    #allocation4 [shape = 's32[1]{0}', space=sflag, size = 0x4, scoped, tag = 'scoped memory for tpu_custom_call.1']
    #allocation5 [shape = 'u8[8192]{0}', space=vmem, size = 0x2000, scoped, tag = 'input window, operand 1, single buffered']
    #allocation6 [shape = 's32[1]{0}', space=sflag, size = 0x4, scoped, tag = 'scoped memory for tpu_custom_call.1']
    #allocation7 [shape = 'u8[512]{0}', space=vmem, size = 0x400, scoped, tag = 'output window, operand 0, single buffered']
    %7 = vsyncpa [#allocation3], 0
    %8 = vsyncpa [#allocation6], 0
    %9 = vsyncpa [#allocation4], 0
    // Predicated region
    $region2: #{tpu_custom_call.1} parent=1 // pred_check
      _
    $region3: #{tpu_custom_call.1} parent=1 // pred_check_branch
      %11 = sbr.rel (0) target = $region5
    $region4: #{tpu_custom_call.1} parent=1 // pred_region
      %s13 = ssub.s32 256, 256
      %14 = vsyncadd [#allocation3], %s13
      %s15 = sshll.u32 [#allocation2], 4
      %s16 = int_to_ptr.vmem [resolvable:$true] %s15
      %21 = dma.hbm_to_vmem [thread:$0]  %s0, 256, %s16, [#allocation3], 128, 128, 8
    $region5: #{tpu_custom_call.1} parent=1 // pred_fallthru
      _
    // Predicated region
    $region6: #{tpu_custom_call.1} parent=1 // pred_check
      _
    $region7: #{tpu_custom_call.1} parent=1 // pred_check_branch
      %23 = sbr.rel (0) target = $region9
    $region8: #{tpu_custom_call.1} parent=1 // pred_region
      %s25 = ssub.s32 256, 256
      %26 = vsyncadd [#allocation6], %s25
      %s27 = sshll.u32 [#allocation5], 4
      %s28 = int_to_ptr.vmem [resolvable:$true] %s27
      %33 = dma.hbm_to_vmem [thread:$0]  %s1, 256, %s28, [#allocation6], 128, 128, 8
    $region9: #{tpu_custom_call.1} parent=1 // pred_fallthru
      _
    // Predicated region
    $region10: #{tpu_custom_call.1} parent=1 // pred_check
      _
    $region11: #{tpu_custom_call.1} parent=1 // pred_check_branch
      %35 = sbr.rel (0) target = $region13
    $region12: #{tpu_custom_call.1} parent=1 // pred_region
      %36 = dma.done [#allocation3], 256
    $region13: #{tpu_custom_call.1} parent=1 // pred_fallthru
      _
    // Predicated region
    $region14: #{tpu_custom_call.1} parent=1 // pred_check
      _
    $region15: #{tpu_custom_call.1} parent=1 // pred_check_branch
      %38 = sbr.rel (0) target = $region17
    $region16: #{tpu_custom_call.1} parent=1 // pred_region
      %39 = dma.done [#allocation6], 256
    $region17: #{tpu_custom_call.1} parent=1 // pred_fallthru
      _
    %s40 = smul.u32 0, 16
    %s41 = scalar_lea.vmem [#allocation2], %s40
    %v42 = vld [vmem:[%s41] sm:$0xff]
    %v43 = vld [vmem:[%s41 + $0x8] sm:$0xff]
    %s44 = scalar_lea.vmem [#allocation5], %s40
    %v45 = vld [vmem:[%s44] sm:$0xff]
    %v46 = vld [vmem:[%s44 + $0x8] sm:$0xff]
    %v47 = vld [vmem:[#allocation2] sm:$0xff]
    %v48 = vld [vmem:[#allocation2 + $0x8] sm:$0xff]
    %v49 = vld [vmem:[#allocation5] sm:$0xff]
    %v50 = vld [vmem:[#allocation5 + $0x8] sm:$0xff]
    %51 = vmatprep.subr.mxu0 0.0
    %52 = vmatpush1.xpose.msra.mxu0 0.0
    %53 = vmatprep.subr.mxu0 0.0
    %54 = vmatpush1.xpose.msra.mxu0 0.0
    %55 = vmatprep.subr.mxu0 0.0
    %56 = vmatpush1.xpose.msra.mxu0 0.0
    %57 = vmatprep.subr.mxu0 0.0
    %58 = vmatpush1.xpose.msra.mxu0 0.0
    %59 = vmatprep.subr.mxu0 0.0
    %60 = vmatpush1.xpose.msra.mxu0 0.0
    %61 = vmatprep.subr.mxu0 0.0
    %62 = vmatpush1.xpose.msra.mxu0 0.0
    %63 = vmatprep.subr.mxu0 0.0
    %64 = vmatpush1.xpose.msra.mxu0 0.0
    %65 = vmatprep.subr.mxu0 0.0
    %66 = vmatpush1.xpose.msra.mxu0 0.0
    %67 = vmatprep.subr.mxu0 0.0
    %68 = vmatpush1.xpose.msra.mxu0 0.0
    %69 = vmatprep.subr.mxu0 0.0
    %70 = vmatpush1.xpose.msra.mxu0 0.0
    %71 = vmatprep.subr.mxu0 0.0
    %72 = vmatpush1.xpose.msra.mxu0 0.0
    %73 = vmatprep.subr.mxu0 0.0
    %74 = vmatpush1.xpose.msra.mxu0 0.0
    %75 = vmatprep.subr.mxu0 0.0
    %76 = vmatpush1.xpose.msra.mxu0 0.0
    %77 = vmatprep.subr.mxu0 0.0
    %78 = vmatpush1.xpose.msra.mxu0 0.0
    %79 = vmatprep.subr.mxu0 0.0
    %80 = vmatpush1.xpose.msra.mxu0 %v48
    %81 = vmatprep.subr.mxu0 0.0
    %82 = vmatpush1.xpose.msra.mxu0 %v47
    %83 = vmatprep.subr.mxu0 0.0
    %84 = vmatpush2.xpose.msra.mxu0 0.0
    %85 = vmatprep.subr.mxu0 0.0
    %86 = vmatpush2.xpose.msra.mxu0 0.0
    %87 = vmatprep.subr.mxu0 0.0
    %88 = vmatpush2.xpose.msra.mxu0 0.0
    %89 = vmatprep.subr.mxu0 0.0
    %90 = vmatpush2.xpose.msra.mxu0 0.0
    %91 = vmatprep.subr.mxu0 0.0
    %92 = vmatpush2.xpose.msra.mxu0 0.0
    %93 = vmatprep.subr.mxu0 0.0
    %94 = vmatpush2.xpose.msra.mxu0 0.0
    %95 = vmatprep.subr.mxu0 0.0
    %96 = vmatpush2.xpose.msra.mxu0 0.0
    %97 = vmatprep.subr.mxu0 0.0
    %98 = vmatpush2.xpose.msra.mxu0 0.0
    %99 = vmatprep.subr.mxu0 0.0
    %100 = vmatpush2.xpose.msra.mxu0 0.0
    %101 = vmatprep.subr.mxu0 0.0
    %102 = vmatpush2.xpose.msra.mxu0 0.0
    %103 = vmatprep.subr.mxu0 0.0
    %104 = vmatpush2.xpose.msra.mxu0 0.0
    %105 = vmatprep.subr.mxu0 0.0
    %106 = vmatpush2.xpose.msra.mxu0 0.0
    %107 = vmatprep.subr.mxu0 0.0
    %108 = vmatpush2.xpose.msra.mxu0 0.0
    %109 = vmatprep.subr.mxu0 0.0
    %110 = vmatpush2.xpose.msra.mxu0 0.0
    %111 = vmatprep.subr.mxu0 0.0
    %112 = vmatpush2.xpose.msra.mxu0 0.0
    %113 = vmatprep.subr.mxu0 0.0
    %114 = vmatpush2.xpose.msra.mxu0 0.0
    %115 = vmatprep.mubr.f32.mxu0 0.0
    %116 = vmatmul.mubr.f32.gmra.mxu0 %v42
    %v117 = vpop.f32.mrf.mxu0
    %v118 = vadd.f32 0.0, %v117
    %v119 = vpop.f32.mrf.mxu0
    %120 = vmatprep.mubr.f32.mxu0 0.0
    %121 = vmatmul.mubr.f32.gmra.mxu0 %v43
    %v122 = vpop.f32.mrf.mxu0
    %v123 = vadd.f32 0.0, %v122
    %v124 = vpop.f32.mrf.mxu0
    %125 = vdwg.mxu0
    %v126 = vmul.f32 %v118, 20.0
    %v127 = vmul.f32 %v123, 20.0
    %128 = vmatprep.subr.mxu0 0.0
    %129 = vmatpush1.xpose.msra.mxu0 0.0
    %130 = vmatprep.subr.mxu0 0.0
    %131 = vmatpush1.xpose.msra.mxu0 0.0
    %132 = vmatprep.subr.mxu0 0.0
    %133 = vmatpush1.xpose.msra.mxu0 0.0
    %134 = vmatprep.subr.mxu0 0.0
    %135 = vmatpush1.xpose.msra.mxu0 0.0
    %136 = vmatprep.subr.mxu0 0.0
    %137 = vmatpush1.xpose.msra.mxu0 0.0
    %138 = vmatprep.subr.mxu0 0.0
    %139 = vmatpush1.xpose.msra.mxu0 0.0
    %140 = vmatprep.subr.mxu0 0.0
    %141 = vmatpush1.xpose.msra.mxu0 0.0
    %142 = vmatprep.subr.mxu0 0.0
    %143 = vmatpush1.xpose.msra.mxu0 0.0
    %144 = vmatprep.subr.mxu0 0.0
    %145 = vmatpush1.xpose.msra.mxu0 0.0
    %146 = vmatprep.subr.mxu0 0.0
    %147 = vmatpush1.xpose.msra.mxu0 0.0
    %148 = vmatprep.subr.mxu0 0.0
    %149 = vmatpush1.xpose.msra.mxu0 0.0
    %150 = vmatprep.subr.mxu0 0.0
    %151 = vmatpush1.xpose.msra.mxu0 0.0
    %152 = vmatprep.subr.mxu0 0.0
    %153 = vmatpush1.xpose.msra.mxu0 0.0
    %154 = vmatprep.subr.mxu0 0.0
    %155 = vmatpush1.xpose.msra.mxu0 0.0
    %156 = vmatprep.subr.mxu0 0.0
    %157 = vmatpush1.xpose.msra.mxu0 %v50
    %158 = vmatprep.subr.mxu0 0.0
    %159 = vmatpush1.xpose.msra.mxu0 %v49
    %160 = vmatprep.subr.mxu0 0.0
    %161 = vmatpush2.xpose.msra.mxu0 0.0
    %162 = vmatprep.subr.mxu0 0.0
    %163 = vmatpush2.xpose.msra.mxu0 0.0
    %164 = vmatprep.subr.mxu0 0.0
    %165 = vmatpush2.xpose.msra.mxu0 0.0
    %166 = vmatprep.subr.mxu0 0.0
    %167 = vmatpush2.xpose.msra.mxu0 0.0
    %168 = vmatprep.subr.mxu0 0.0
    %169 = vmatpush2.xpose.msra.mxu0 0.0
    %170 = vmatprep.subr.mxu0 0.0
    %171 = vmatpush2.xpose.msra.mxu0 0.0
    %172 = vmatprep.subr.mxu0 0.0
    %173 = vmatpush2.xpose.msra.mxu0 0.0
    %174 = vmatprep.subr.mxu0 0.0
    %175 = vmatpush2.xpose.msra.mxu0 0.0
    %176 = vmatprep.subr.mxu0 0.0
    %177 = vmatpush2.xpose.msra.mxu0 0.0
    %178 = vmatprep.subr.mxu0 0.0
    %179 = vmatpush2.xpose.msra.mxu0 0.0
    %180 = vmatprep.subr.mxu0 0.0
    %181 = vmatpush2.xpose.msra.mxu0 0.0
    %182 = vmatprep.subr.mxu0 0.0
    %183 = vmatpush2.xpose.msra.mxu0 0.0
    %184 = vmatprep.subr.mxu0 0.0
    %185 = vmatpush2.xpose.msra.mxu0 0.0
    %186 = vmatprep.subr.mxu0 0.0
    %187 = vmatpush2.xpose.msra.mxu0 0.0
    %188 = vmatprep.subr.mxu0 0.0
    %189 = vmatpush2.xpose.msra.mxu0 0.0
    %190 = vmatprep.subr.mxu0 0.0
    %191 = vmatpush2.xpose.msra.mxu0 0.0
    %192 = vmatprep.mubr.f32.mxu0 0.0
    %193 = vmatmul.mubr.f32.gmra.mxu0 %v45
    %v194 = vpop.f32.mrf.mxu0
    %v195 = vadd.f32 0.0, %v194
    %v196 = vpop.f32.mrf.mxu0
    %197 = vmatprep.mubr.f32.mxu0 0.0
    %198 = vmatmul.mubr.f32.gmra.mxu0 %v46
    %v199 = vpop.f32.mrf.mxu0
    %v200 = vadd.f32 0.0, %v199
    %v201 = vpop.f32.mrf.mxu0
    %202 = vdwg.mxu0
    %v203 = vmul.f32 %v195, 20.0
    %v204 = vmul.f32 %v200, 20.0
    %v205 = vlaneseq
    %v206 = vshrl.u32 %v205, 7
    %v207 = vadd.s32 %v206, 8
    %v208 = vstv %s40
    %v209 = vadd.s32 %v208, %v206
    %v210 = vadd.s32 %v208, %v207
    %v211 = vlaneseq
    %v212 = vand.u32 %v211, 127
    %vm213 = vcmp.lt.s32.totalorder %v212, 16
    %vm214 = vcmp.ne.s32.totalorder %v209, %v212
    %vm215 = vcmp.ne.s32.totalorder %v210, %v212
    %vm216 = vcmp.lt.s32.totalorder %v209, 0
    %v217 = vsub.s32 0, %v209
    %v218 = vsel %vm216, %v217, %v209
    %v219 = vshrl.u32 %v218, 3
    %v220 = vand.u32 %v218, 7
    %v221 = vsub.s32 0, %v220
    %v222 = vsel %vm216, %v221, %v220
    %vm223 = vcmp.lt.s32.totalorder %v210, 0
    %v224 = vsub.s32 0, %v210
    %v225 = vsel %vm223, %v224, %v210
    %v226 = vshrl.u32 %v225, 3
    %v227 = vand.u32 %v225, 7
    %v228 = vsub.s32 0, %v227
    %v229 = vsel %vm223, %v228, %v227
    %vm230 = vcmp.ne.s32.totalorder %v222, 0
    %vm231 = vcmp.ne.s32.totalorder %v229, 0
    %vm232 = vcmp.lt.s32.totalorder %v222, 0
    %vm233 = vcmp.lt.s32.totalorder %v229, 0
    %vm234 = vmand %vm232, %vm230
    %vm235 = vmand %vm233, %vm231
    %v236 = vadd.s32 %v222, 8
    %v237 = vadd.s32 %v229, 8
    %v238 = vsel %vm234, %v236, %v222
    %v239 = vsel %vm235, %v237, %v229
    %vm240 = vcmp.lt.s32.totalorder %v212, 0
    %v241 = vsub.s32 0, %v212
    %v242 = vsel %vm240, %v241, %v212
    %v243 = vshrl.u32 %v242, 3
    %v244 = vand.u32 %v242, 7
    %v245 = vsub.s32 0, %v244
    %v246 = vsel %vm240, %v245, %v244
    %vm247 = vcmp.ne.s32.totalorder %v246, 0
    %vm248 = vcmp.lt.s32.totalorder %v246, 0
    %vm249 = vmand %vm248, %vm247
    %v250 = vadd.s32 %v246, 8
    %v251 = vsel %vm249, %v250, %v246
    %vm252 = vcmp.eq.s32.totalorder %v238, %v251
    %vm253 = vcmp.eq.s32.totalorder %v239, %v251
    %v254 = vsel %vm213, %v126, -1e+30
    %v255 = vsel %vm213, %v127, -1e+30
    %v256 = vsel %vm213, %v203, -1e+30
    %v257 = vsel %vm213, %v204, -1e+30
    %vm258 = vcmask 130048
    %v259 = vsel %vm258, %v254, -inf
    %260 = vmax.xlane.f32.xlu0 %v259
    %v261 = vpop.xlane.xlu0 %260
    %v262 = vsel %vm258, %v255, -inf
    %263 = vmax.xlane.f32.xlu0 %v262
    %v264 = vpop.xlane.xlu0 %263
    %v265 = vsel %vm258, %v256, -inf
    %266 = vmax.xlane.f32.xlu0 %v265
    %v267 = vpop.xlane.xlu0 %266
    %v268 = vsel %vm258, %v257, -inf
    %269 = vmax.xlane.f32.xlu0 %v268
    %v270 = vpop.xlane.xlu0 %269
    %v271 = vsub.f32 %v254, %v261
    %v272 = vsub.f32 %v255, %v264
    %v273 = vsub.f32 %v256, %v267
    %v274 = vsub.f32 %v257, %v270
    %vm275 = vmand %vm214, %vm213
    %vm276 = vmand %vm215, %vm213
    %v277 = vmul.f32 %v271, 1.442695
    %v278 = vpow.pop %v277
    %v279 = vmul.f32 %v272, 1.442695
    %v280 = vpow.pop %v279
    %v281 = vsel %vm275, %v278, 0.0
    %v282 = vsel %vm276, %v280, 0.0
    %v283 = vsel %vm258, %v281, 0.0
    %284 = vadd.xlane.f32.xlu0 %v283
    %v285 = vpop.xlane.xlu0 %284
    %v286 = vsel %vm258, %v282, 0.0
    %287 = vadd.xlane.f32.xlu0 %v286
    %v288 = vpop.xlane.xlu0 %287
    %v289 = vmul.f32 %v273, 1.442695
    %v290 = vpow.pop %v289
    %v291 = vmul.f32 %v274, 1.442695
    %v292 = vpow.pop %v291
    %v293 = vsel %vm275, %v290, 0.0
    %v294 = vsel %vm276, %v292, 0.0
    %v295 = vsel %vm258, %v293, 0.0
    %296 = vadd.xlane.f32.xlu0 %v295
    %v297 = vpop.xlane.xlu0 %296
    %v298 = vsel %vm258, %v294, 0.0
    %299 = vadd.xlane.f32.xlu0 %v298
    %v300 = vpop.xlane.xlu0 %299
    %vm301 = vmand %vm252, %vm275
    %vm302 = vmand %vm253, %vm276
    %v303 = vsel %vm301, %v271, 0.0
    %v304 = vsel %vm302, %v272, 0.0
    %v305 = vsel %vm258, %v303, 0.0
    %306 = vadd.xlane.f32.xlu0 %v305
    %v307 = vpop.xlane.xlu0 %306
    %v308 = vsel %vm258, %v304, 0.0
    %309 = vadd.xlane.f32.xlu0 %v308
    %v310 = vpop.xlane.xlu0 %309
    %v311 = vadd.f32 %v285, %v297
    %v312 = vadd.f32 %v288, %v300
    %v313 = vlog2.pop %v311
    %v314 = vmul.f32 %v313, 0.6931472
    %v315 = vlog2.pop %v312
    %v316 = vmul.f32 %v315, 0.6931472
    %v317 = vsub.f32 %v307, %v314
    %v318 = vsub.f32 %v310, %v316
    %vm319 = vcmp.lt.s32.totalorder %v209, 16
    %vm320 = vcmp.lt.s32.totalorder %v210, 16
    %v321 = vsub.f32 0.0, %v317
    %v322 = vsub.f32 0.0, %v318
    %v323 = vsel %vm319, %v321, 0.0
    %v324 = vsel %vm320, %v322, 0.0
    %v325 = vadd.f32 %v323, %v324
    %v326 = vrot.slane %v325, 4
    %v327 = vadd.f32 %v325, %v326
    %v328 = vrot.slane %v327, 2
    %v329 = vadd.f32 %v327, %v328
    %v330 = vrot.slane %v329, 1
    %v331 = vadd.f32 %v329, %v330
    %p332 = scmp.eq.s32.totalorder 0, 0
    // Predicated region
    $region18: #{tpu_custom_call.1} parent=1 // pred_check
      %p333 = pneg %p332
    $region19: #{tpu_custom_call.1} parent=1 // pred_check_branch
      %335 = sbr.rel (%p333) target = $region21
    $region20: #{tpu_custom_call.1} parent=1 // pred_region
      %vm336 = vcmask 0
      %337 = vst.msk [vmem:[#allocation7] sm:$0x1] %vm336, 0.0
    $region21: #{tpu_custom_call.1} parent=1 // pred_fallthru
      _
    %v338 = vld [vmem:[#allocation7] sm:$0x1]
    %v339 = vadd.f32 %v338, %v331
    %vm340 = vcmask 0
    %341 = vst.msk [vmem:[#allocation7] sm:$0x1] %vm340, %v339
    // Predicated region
    $region22: #{tpu_custom_call.1} parent=1 // pred_check
      _
    $region23: #{tpu_custom_call.1} parent=1 // pred_check_branch
      %343 = sbr.rel (0) target = $region25
    $region24: #{tpu_custom_call.1} parent=1 // pred_region
      %s345 = ssub.s32 16, 16
      %346 = vsyncadd [#allocation4], %s345
      %s348 = sshll.u32 [#allocation7], 4
      %s349 = int_to_ptr.vmem [resolvable:$true] %s348
      %351 = dma.vmem_to_hbm [thread:$0]  %s349, 16, %s2, [#allocation4]
    $region25: #{tpu_custom_call.1} parent=1 // pred_fallthru
      _
    // Predicated region
    $region26: #{tpu_custom_call.1} parent=1 // pred_check
      _
    $region27: #{tpu_custom_call.1} parent=1 // pred_check_branch
      %353 = sbr.rel (0) target = $region29
    $region28: #{tpu_custom_call.1} parent=1 // pred_region
      %354 = dma.done [#allocation4], 16
    $region29: #{tpu_custom_call.1} parent=1 // pred_fallthru
      _
    %355 = vsyncpa [#allocation3], 1
    %356 = vsyncpa [#allocation6], 1
    %357 = vsyncpa [#allocation4], 1

</llo_original>
